<compile_context>
chip_gen: v5e
topology: v5e:2x2
jax: 0.10.0
libtpu: 0.0.40
codegen_flags: <defaults>
</compile_context>

<pallas_src>
import jax
import jax.numpy as jnp
from jax.experimental import pallas as pl
from jax.experimental.pallas import tpu as pltpu  # noqa: F401  (TPU backend)


def _round_up(n: int, m: int) -> int:
    return ((n + m - 1) // m) * m


def _lstm_cell_kernel(xh_ref, c_ref, w_ref, h_out_ref, c_out_ref):
    # One fused matvec on the MXU: [x, h, 1, 0-pad] @ [Wi_T; Wh_T; b; 0].
    z = jnp.dot(xh_ref[...], w_ref[...],
                preferred_element_type=jnp.float32)        # (1, 4*Hp) f32

    Hp = h_out_ref.shape[1]
    # Gate slices land on exact 128-lane (vreg) boundaries -> free slicing.
    i_t = jax.nn.sigmoid(z[:, 0 * Hp:1 * Hp])
    f_t = jax.nn.sigmoid(z[:, 1 * Hp:2 * Hp])
    g_t = jnp.tanh(z[:, 2 * Hp:3 * Hp])
    o_t = jax.nn.sigmoid(z[:, 3 * Hp:4 * Hp])

    # Cell state carried / accumulated in f32.
    c_t = f_t * c_ref[...].astype(jnp.float32) + i_t * g_t
    h_t = o_t * jnp.tanh(c_t)

    # Lane-dense full-width (1, Hp) stores.
    h_out_ref[...] = h_t.astype(h_out_ref.dtype)
    c_out_ref[...] = c_t.astype(c_out_ref.dtype)


@jax.jit
def lstm_cell_pallas(x, h_prev, c_prev, w_fused):
    """One LSTM cell step.  x:(I,), h_prev/c_prev:(H,), w_fused:(Kp, 4*Hp)."""
    I = x.shape[0]
    H = h_prev.shape[0]
    Kp, N4 = w_fused.shape
    Hp = N4 // 4
    dtype = x.dtype

    # Fused input row: [x, h, 1 (bias row selector), zero pad] -> (1, Kp).
    one = jnp.ones((1,), dtype)
    tail = jnp.zeros((Kp - I - H - 1,), dtype)
    xh = jnp.concatenate([x, h_prev, one, tail]).reshape(1, Kp)
    c2 = jnp.pad(c_prev, (0, Hp - H)).reshape(1, Hp)

    full = lambda shape: pl.BlockSpec(shape, lambda: tuple(0 for _ in shape))

    h_t, c_t = pl.pallas_call(
        _lstm_cell_kernel,
        out_shape=(jax.ShapeDtypeStruct((1, Hp), dtype),
                   jax.ShapeDtypeStruct((1, Hp), dtype)),
        grid=(),
        in_specs=[full((1, Kp)), full((1, Hp)), full((Kp, 4 * Hp))],
        out_specs=(full((1, Hp)), full((1, Hp))),
    )(xh, c2, w_fused)

    return h_t[0, :H], c_t[0, :H]


class LSTMPallas:
    """Deterministic-parameter mirror of the PyTorch LSTM cell module."""

    def __init__(self, input_size: int, hidden_size: int, dtype=jnp.float32,
                 key=jax.random.PRNGKey(0)):
        self.input_size = int(input_size)
        self.hidden_size = int(hidden_size)
        self.dtype = dtype

        I, H = self.input_size, self.hidden_size
        ks = jax.random.split(key, 8)
        # Per-gate weights, same shapes as the PyTorch module (randn init).
        W_ii = jax.random.normal(ks[0], (H, I), dtype)
        W_if = jax.random.normal(ks[1], (H, I), dtype)
        W_ig = jax.random.normal(ks[2], (H, I), dtype)
        W_io = jax.random.normal(ks[3], (H, I), dtype)
        W_hi = jax.random.normal(ks[4], (H, H), dtype)
        W_hf = jax.random.normal(ks[5], (H, H), dtype)
        W_hg = jax.random.normal(ks[6], (H, H), dtype)
        W_ho = jax.random.normal(ks[7], (H, H), dtype)
        # Biases are zeros in the reference module (b_i* + b_h* folded).
        b_i = jnp.zeros((H,), dtype)
        b_f = jnp.zeros((H,), dtype)
        b_g = jnp.zeros((H,), dtype)
        b_o = jnp.zeros((H,), dtype)

        # Padded, fused kernel layout.
        #   Kp rows : [0..I)   -> Wi_T,  [I..I+H) -> Wh_T,  row I+H -> bias, rest 0
        #   4*Hp cols: gate k occupies [k*Hp, k*Hp + H), rest 0 (lane-dense gates)
        self.Hp = _round_up(H, 128)
        self.Kp = _round_up(I + H + 1, 128)
        w = jnp.zeros((self.Kp, 4 * self.Hp), dtype)
        gates = ((W_ii, W_hi, b_i), (W_if, W_hf, b_f),
                 (W_ig, W_hg, b_g), (W_io, W_ho, b_o))
        for k, (Wi, Wh, bg) in enumerate(gates):
            col = k * self.Hp
            w = w.at[:I, col:col + H].set(Wi.T)
            w = w.at[I:I + H, col:col + H].set(Wh.T)
            w = w.at[I + H, col:col + H].set(bg)
        self.W_fused = w                                   # (Kp, 4*Hp)

        # Keep raw gate weights for the pure-JAX reference check.
        self._raw = (W_ii, W_if, W_ig, W_io, W_hi, W_hf, W_hg, W_ho)

    def __call__(self, x, hidden=None):
        if hidden is None:
            h_prev = jnp.zeros((self.hidden_size,), x.dtype)
            c_prev = jnp.zeros((self.hidden_size,), x.dtype)
        else:
            h_prev, c_prev = hidden
        h_t, c_t = lstm_cell_pallas(x, h_prev, c_prev, self.W_fused)
        return h_t, (h_t, c_t)

    def reference(self, x, hidden=None):
        (W_ii, W_if, W_ig, W_io, W_hi, W_hf, W_hg, W_ho) = self._raw
        if hidden is None:
            h_prev = jnp.zeros((self.hidden_size,), x.dtype)
            c_prev = jnp.zeros((self.hidden_size,), x.dtype)
        else:
            h_prev, c_prev = hidden
        sigm, tanh = jax.nn.sigmoid, jnp.tanh
        i_t = sigm(W_ii @ x + W_hi @ h_prev)
        f_t = sigm(W_if @ x + W_hf @ h_prev)
        g_t = tanh(W_ig @ x + W_hg @ h_prev)
        o_t = sigm(W_io @ x + W_ho @ h_prev)
        c_t = f_t * c_prev + i_t * g_t
        h_t = o_t * tanh(c_t)
        return h_t, (h_t, c_t)


if __name__ == "__main__":
    input_size, hidden_size = 16, 32
    key = jax.random.PRNGKey(0)
    k_param, k_x, k_h, k_c = jax.random.split(key, 4)

    model = LSTMPallas(input_size, hidden_size, key=k_param)

    x = jax.random.normal(k_x, (input_size,), jnp.float32)
    h0 = jax.random.normal(k_h, (hidden_size,), jnp.float32)
    c0 = jax.random.normal(k_c, (hidden_size,), jnp.float32)

    # Case 1: hidden=None (zero initial state)
    h_t, (h_same, c_t) = model(x)
    # Case 2: explicit hidden state
    h_t2, (_, c_t2) = model(x, (h0, c0))

    jax.block_until_ready((h_t, c_t, h_t2, c_t2))

    # Correctness check against a pure-JAX reference.
    rh, (_, rc) = model.reference(x)
    rh2, (_, rc2) = model.reference(x, (h0, c0))
    assert jnp.allclose(h_t, rh, atol=5e-5, rtol=1e-5)
    assert jnp.allclose(c_t, rc, atol=5e-5, rtol=1e-5)
    assert jnp.allclose(h_t2, rh2, atol=5e-5, rtol=1e-5)
    assert jnp.allclose(c_t2, rc2, atol=5e-5, rtol=1e-5)

    print("KERNEL_OK")
</pallas_src>

<mosaic_0001>
module attributes {stable_mosaic.version = 11 : i64} {
  func.func @_lstm_cell_kernel(%arg0: memref<1x128xf32, #tpu.memory_space<vmem>>, %arg1: memref<1x128xf32, #tpu.memory_space<vmem>>, %arg2: memref<128x512xf32, #tpu.memory_space<vmem>>, %arg3: memref<1x128xf32, #tpu.memory_space<vmem>>, %arg4: memref<1x128xf32, #tpu.memory_space<vmem>>) attributes {dimension_semantics = [], scalar_prefetch = 0 : i64, scratch_operands = 0 : i64, tpu.core_type = #tpu.core_type<tc>} {
    %c0 = arith.constant 0 : index
    %c0_0 = arith.constant 0 : index
    %0 = vector.load %arg0[%c0, %c0_0] : memref<1x128xf32, #tpu.memory_space<vmem>>, vector<1x128xf32>
    %c0_1 = arith.constant 0 : index
    %c0_2 = arith.constant 0 : index
    %1 = vector.load %arg2[%c0_1, %c0_2] : memref<128x512xf32, #tpu.memory_space<vmem>>, vector<128x512xf32>
    %cst = arith.constant dense<0.000000e+00> : vector<1x512xf32>
    %2 = tpu.matmul %0, %1, %cst {dimension_numbers = #tpu.dot_dimension_numbers<[1], [0], [0], [1], [0, 0, 1, 1], [], []>} : vector<1x128xf32>, vector<128x512xf32>, vector<1x512xf32> -> vector<1x512xf32>
    %3 = vector.extract_strided_slice %2 {offsets = [0, 0], sizes = [1, 128], strides = [1, 1]} : vector<1x512xf32> to vector<1x128xf32>
    %4 = arith.negf %3 : vector<1x128xf32>
    %5 = math.exp %4 : vector<1x128xf32>
    %cst_3 = arith.constant 1.000000e+00 : f32
    %6 = vector.broadcast %cst_3 : f32 to vector<1x128xf32>
    %7 = arith.addf %6, %5 : vector<1x128xf32>
    %8 = arith.divf %6, %7 : vector<1x128xf32>
    %9 = vector.extract_strided_slice %2 {offsets = [0, 128], sizes = [1, 128], strides = [1, 1]} : vector<1x512xf32> to vector<1x128xf32>
    %10 = arith.negf %9 : vector<1x128xf32>
    %11 = math.exp %10 : vector<1x128xf32>
    %cst_4 = arith.constant 1.000000e+00 : f32
    %12 = vector.broadcast %cst_4 : f32 to vector<1x128xf32>
    %13 = arith.addf %12, %11 : vector<1x128xf32>
    %14 = arith.divf %12, %13 : vector<1x128xf32>
    %15 = vector.extract_strided_slice %2 {offsets = [0, 256], sizes = [1, 128], strides = [1, 1]} : vector<1x512xf32> to vector<1x128xf32>
    %16 = math.tanh %15 : vector<1x128xf32>
    %17 = vector.extract_strided_slice %2 {offsets = [0, 384], sizes = [1, 128], strides = [1, 1]} : vector<1x512xf32> to vector<1x128xf32>
    %18 = arith.negf %17 : vector<1x128xf32>
    %19 = math.exp %18 : vector<1x128xf32>
    %cst_5 = arith.constant 1.000000e+00 : f32
    %20 = vector.broadcast %cst_5 : f32 to vector<1x128xf32>
    %21 = arith.addf %20, %19 : vector<1x128xf32>
    %22 = arith.divf %20, %21 : vector<1x128xf32>
    %c0_6 = arith.constant 0 : index
    %c0_7 = arith.constant 0 : index
    %23 = vector.load %arg1[%c0_6, %c0_7] : memref<1x128xf32, #tpu.memory_space<vmem>>, vector<1x128xf32>
    %24 = arith.mulf %14, %23 : vector<1x128xf32>
    %25 = arith.mulf %8, %16 : vector<1x128xf32>
    %26 = arith.addf %24, %25 : vector<1x128xf32>
    %27 = math.tanh %26 : vector<1x128xf32>
    %28 = arith.mulf %22, %27 : vector<1x128xf32>
    %c0_8 = arith.constant 0 : index
    %c0_9 = arith.constant 0 : index
    %29 = vector.load %arg3[%c0_8, %c0_9] : memref<1x128xf32, #tpu.memory_space<vmem>>, vector<1x128xf32>
    tpu.vector_store %arg3[%c0_8, %c0_9], %28 {strides = array<i32>} : memref<1x128xf32, #tpu.memory_space<vmem>>, vector<1x128xf32>,
    %c0_10 = arith.constant 0 : index
    %c0_11 = arith.constant 0 : index
    %30 = vector.load %arg4[%c0_10, %c0_11] : memref<1x128xf32, #tpu.memory_space<vmem>>, vector<1x128xf32>
    tpu.vector_store %arg4[%c0_10, %c0_11], %26 {strides = array<i32>} : memref<1x128xf32, #tpu.memory_space<vmem>>, vector<1x128xf32>,
    return
  }
}

</mosaic_0001>

<llo_original>
// kernel: lstm_cell_pallas.1
$region0: #{lstm_cell_pallas.1}
  #allocation0 [shape = 'u32[]', space=smem, size = 0x4, offset = 0x4, fixed_abs, tag = 'smem constant byte address 0x4 - core index']
  #allocation1 [shape = 'u32[72,128]{1,0:T(1,128)}', space=vmem, size = 0x9000, scoped, tag = 'internal scratch']
  %s0 = inlined_call_operand.vmem [shape: f32[1,128], index: 0, kind: input, shape index: {}]
  %s1 = inlined_call_operand.vmem [shape: f32[1,128], index: 1, kind: input, shape index: {}]
  %s2 = inlined_call_operand.hbm [shape: f32[128,512], index: 2, kind: input, shape index: {}]
  %s3 = inlined_call_operand.vmem [shape: f32[1,128], index: 3, kind: output, shape index: {0}]
  %s4 = inlined_call_operand.vmem [shape: f32[1,128], index: 4, kind: output, shape index: {1}]
  %5 = xla_tuple %s3, %s4
  %s6 = sld [smem:[#allocation0]]
  $region34: #{lstm_cell_pallas.1} parent=0
    _
  %s8 = ssub.s32 1, %s6
  %s9 = scalar_select 0, %s8, %s6
  $region1: #{lstm_cell_pallas.1} parent=0
    #allocation2 [shape = 'u8[262144]{0}', space=vmem, size = 0x40000, scoped, tag = 'input window, operand 2, single buffered']
    #allocation3 [shape = 's32[1]{0}', space=sflag, size = 0x4, scoped, tag = 'scoped memory for lstm_cell_pallas.1']
    %10 = vsyncpa [#allocation3], 0
    // Predicated region
    $region2: #{lstm_cell_pallas.1} parent=1 // pred_check
      _
    $region3: #{lstm_cell_pallas.1} parent=1 // pred_check_branch
      %12 = sbr.rel (0) target = $region5
    $region4: #{lstm_cell_pallas.1} parent=1 // pred_region
      _
    $region5: #{lstm_cell_pallas.1} parent=1 // pred_fallthru
      _
    // Predicated region
    $region6: #{lstm_cell_pallas.1} parent=1 // pred_check
      _
    $region7: #{lstm_cell_pallas.1} parent=1 // pred_check_branch
      %14 = sbr.rel (0) target = $region9
    $region8: #{lstm_cell_pallas.1} parent=1 // pred_region
      _
    $region9: #{lstm_cell_pallas.1} parent=1 // pred_fallthru
      _
    // Predicated region
    $region10: #{lstm_cell_pallas.1} parent=1 // pred_check
      _
    $region11: #{lstm_cell_pallas.1} parent=1 // pred_check_branch
      %16 = sbr.rel (0) target = $region13
    $region12: #{lstm_cell_pallas.1} parent=1 // pred_region
      %18 = vsyncadd [#allocation3], 0
      %s19 = sshll.u32 %s2, 4
      %s20 = int_to_ptr.hbm [resolvable:$true] %s19
      %s21 = sshll.u32 [#allocation2], 4
      %s22 = int_to_ptr.vmem [resolvable:$true] %s21
      %27 = dma.hbm_to_vmem [thread:$0]  %s20, 8192, %s22, [#allocation3], 512, 512, 32
    $region13: #{lstm_cell_pallas.1} parent=1 // pred_fallthru
      _
    // Predicated region
    $region14: #{lstm_cell_pallas.1} parent=1 // pred_check
      _
    $region15: #{lstm_cell_pallas.1} parent=1 // pred_check_branch
      %29 = sbr.rel (0) target = $region17
    $region16: #{lstm_cell_pallas.1} parent=1 // pred_region
      %31 = dma.done [#allocation3], 8192
    $region17: #{lstm_cell_pallas.1} parent=1 // pred_fallthru
      _
    %v32 = vld [vmem:[%s0] sm:$0x1]
    %v33 = vld [vmem:[#allocation2] sm:$0xff]
    %v34 = vld [vmem:[#allocation2 + $0x8] sm:$0xff]
    %v35 = vld [vmem:[#allocation2 + $0x10] sm:$0xff]
    %v36 = vld [vmem:[#allocation2 + $0x18] sm:$0xff]
    %v37 = vld [vmem:[#allocation2 + $0x20] sm:$0xff]
    %v38 = vld [vmem:[#allocation2 + $0x28] sm:$0xff]
    %v39 = vld [vmem:[#allocation2 + $0x30] sm:$0xff]
    %v40 = vld [vmem:[#allocation2 + $0x38] sm:$0xff]
    %v41 = vld [vmem:[#allocation2 + $0x40] sm:$0xff]
    %v42 = vld [vmem:[#allocation2 + $0x48] sm:$0xff]
    %v43 = vld [vmem:[#allocation2 + $0x50] sm:$0xff]
    %v44 = vld [vmem:[#allocation2 + $0x58] sm:$0xff]
    %v45 = vld [vmem:[#allocation2 + $0x60] sm:$0xff]
    %v46 = vld [vmem:[#allocation2 + $0x68] sm:$0xff]
    %v47 = vld [vmem:[#allocation2 + $0x70] sm:$0xff]
    %v48 = vld [vmem:[#allocation2 + $0x78] sm:$0xff]
    %v49 = vld [vmem:[#allocation2 + $0x80] sm:$0xff]
    %v50 = vld [vmem:[#allocation2 + $0x88] sm:$0xff]
    %v51 = vld [vmem:[#allocation2 + $0x90] sm:$0xff]
    %v52 = vld [vmem:[#allocation2 + $0x98] sm:$0xff]
    %v53 = vld [vmem:[#allocation2 + $0xa0] sm:$0xff]
    %v54 = vld [vmem:[#allocation2 + $0xa8] sm:$0xff]
    %v55 = vld [vmem:[#allocation2 + $0xb0] sm:$0xff]
    %v56 = vld [vmem:[#allocation2 + $0xb8] sm:$0xff]
    %v57 = vld [vmem:[#allocation2 + $0xc0] sm:$0xff]
    %v58 = vld [vmem:[#allocation2 + $0xc8] sm:$0xff]
    %v59 = vld [vmem:[#allocation2 + $0xd0] sm:$0xff]
    %v60 = vld [vmem:[#allocation2 + $0xd8] sm:$0xff]
    %v61 = vld [vmem:[#allocation2 + $0xe0] sm:$0xff]
    %v62 = vld [vmem:[#allocation2 + $0xe8] sm:$0xff]
    %v63 = vld [vmem:[#allocation2 + $0xf0] sm:$0xff]
    %v64 = vld [vmem:[#allocation2 + $0xf8] sm:$0xff]
    %v65 = vld [vmem:[#allocation2 + $0x100] sm:$0xff]
    %v66 = vld [vmem:[#allocation2 + $0x108] sm:$0xff]
    %v67 = vld [vmem:[#allocation2 + $0x110] sm:$0xff]
    %v68 = vld [vmem:[#allocation2 + $0x118] sm:$0xff]
    %v69 = vld [vmem:[#allocation2 + $0x120] sm:$0xff]
    %v70 = vld [vmem:[#allocation2 + $0x128] sm:$0xff]
    %v71 = vld [vmem:[#allocation2 + $0x130] sm:$0xff]
    %v72 = vld [vmem:[#allocation2 + $0x138] sm:$0xff]
    %v73 = vld [vmem:[#allocation2 + $0x140] sm:$0xff]
    %v74 = vld [vmem:[#allocation2 + $0x148] sm:$0xff]
    %v75 = vld [vmem:[#allocation2 + $0x150] sm:$0xff]
    %v76 = vld [vmem:[#allocation2 + $0x158] sm:$0xff]
    %v77 = vld [vmem:[#allocation2 + $0x160] sm:$0xff]
    %v78 = vld [vmem:[#allocation2 + $0x168] sm:$0xff]
    %v79 = vld [vmem:[#allocation2 + $0x170] sm:$0xff]
    %v80 = vld [vmem:[#allocation2 + $0x178] sm:$0xff]
    %v81 = vld [vmem:[#allocation2 + $0x180] sm:$0xff]
    %v82 = vld [vmem:[#allocation2 + $0x188] sm:$0xff]
    %v83 = vld [vmem:[#allocation2 + $0x190] sm:$0xff]
    %v84 = vld [vmem:[#allocation2 + $0x198] sm:$0xff]
    %v85 = vld [vmem:[#allocation2 + $0x1a0] sm:$0xff]
    %v86 = vld [vmem:[#allocation2 + $0x1a8] sm:$0xff]
    %v87 = vld [vmem:[#allocation2 + $0x1b0] sm:$0xff]
    %v88 = vld [vmem:[#allocation2 + $0x1b8] sm:$0xff]
    %v89 = vld [vmem:[#allocation2 + $0x1c0] sm:$0xff]
    %v90 = vld [vmem:[#allocation2 + $0x1c8] sm:$0xff]
    %v91 = vld [vmem:[#allocation2 + $0x1d0] sm:$0xff]
    %v92 = vld [vmem:[#allocation2 + $0x1d8] sm:$0xff]
    %v93 = vld [vmem:[#allocation2 + $0x1e0] sm:$0xff]
    %v94 = vld [vmem:[#allocation2 + $0x1e8] sm:$0xff]
    %v95 = vld [vmem:[#allocation2 + $0x1f0] sm:$0xff]
    %v96 = vld [vmem:[#allocation2 + $0x1f8] sm:$0xff]
    %97 = vmatpush.msra.mxu0 %v93
    %98 = vmatpush.msra.mxu0 %v89
    %99 = vmatpush.msra.mxu0 %v85
    %100 = vmatpush.msra.mxu0 %v81
    %101 = vmatpush.msra.mxu0 %v77
    %102 = vmatpush.msra.mxu0 %v73
    %103 = vmatpush.msra.mxu0 %v69
    %104 = vmatpush.msra.mxu0 %v65
    %105 = vmatpush.msra.mxu0 %v61
    %106 = vmatpush.msra.mxu0 %v57
    %107 = vmatpush.msra.mxu0 %v53
    %108 = vmatpush.msra.mxu0 %v49
    %109 = vmatpush.msra.mxu0 %v45
    %110 = vmatpush.msra.mxu0 %v41
    %111 = vmatpush.msra.mxu0 %v37
    %112 = vmatpush.msra.mxu0 %v33
    %113 = vmatmul.f32.gmra.mxu0 %v32
    %v114 = vpop.f32.mrf.mxu0
    %v115 = vadd.f32 0.0, %v114
    %116 = vdwg.mxu0
    %117 = vmatpush.msra.mxu0 %v94
    %118 = vmatpush.msra.mxu0 %v90
    %119 = vmatpush.msra.mxu0 %v86
    %120 = vmatpush.msra.mxu0 %v82
    %121 = vmatpush.msra.mxu0 %v78
    %122 = vmatpush.msra.mxu0 %v74
    %123 = vmatpush.msra.mxu0 %v70
    %124 = vmatpush.msra.mxu0 %v66
    %125 = vmatpush.msra.mxu0 %v62
    %126 = vmatpush.msra.mxu0 %v58
    %127 = vmatpush.msra.mxu0 %v54
    %128 = vmatpush.msra.mxu0 %v50
    %129 = vmatpush.msra.mxu0 %v46
    %130 = vmatpush.msra.mxu0 %v42
    %131 = vmatpush.msra.mxu0 %v38
    %132 = vmatpush.msra.mxu0 %v34
    %133 = vmatmul.f32.gmra.mxu0 %v32
    %v134 = vpop.f32.mrf.mxu0
    %v135 = vadd.f32 0.0, %v134
    %136 = vdwg.mxu0
    %137 = vmatpush.msra.mxu0 %v95
    %138 = vmatpush.msra.mxu0 %v91
    %139 = vmatpush.msra.mxu0 %v87
    %140 = vmatpush.msra.mxu0 %v83
    %141 = vmatpush.msra.mxu0 %v79
    %142 = vmatpush.msra.mxu0 %v75
    %143 = vmatpush.msra.mxu0 %v71
    %144 = vmatpush.msra.mxu0 %v67
    %145 = vmatpush.msra.mxu0 %v63
    %146 = vmatpush.msra.mxu0 %v59
    %147 = vmatpush.msra.mxu0 %v55
    %148 = vmatpush.msra.mxu0 %v51
    %149 = vmatpush.msra.mxu0 %v47
    %150 = vmatpush.msra.mxu0 %v43
    %151 = vmatpush.msra.mxu0 %v39
    %152 = vmatpush.msra.mxu0 %v35
    %153 = vmatmul.f32.gmra.mxu0 %v32
    %v154 = vpop.f32.mrf.mxu0
    %v155 = vadd.f32 0.0, %v154
    %156 = vdwg.mxu0
    %157 = vmatpush.msra.mxu0 %v96
    %158 = vmatpush.msra.mxu0 %v92
    %159 = vmatpush.msra.mxu0 %v88
    %160 = vmatpush.msra.mxu0 %v84
    %161 = vmatpush.msra.mxu0 %v80
    %162 = vmatpush.msra.mxu0 %v76
    %163 = vmatpush.msra.mxu0 %v72
    %164 = vmatpush.msra.mxu0 %v68
    %165 = vmatpush.msra.mxu0 %v64
    %166 = vmatpush.msra.mxu0 %v60
    %167 = vmatpush.msra.mxu0 %v56
    %168 = vmatpush.msra.mxu0 %v52
    %169 = vmatpush.msra.mxu0 %v48
    %170 = vmatpush.msra.mxu0 %v44
    %171 = vmatpush.msra.mxu0 %v40
    %172 = vmatpush.msra.mxu0 %v36
    %173 = vmatmul.f32.gmra.mxu0 %v32
    %v174 = vpop.f32.mrf.mxu0
    %v175 = vadd.f32 0.0, %v174
    %176 = vdwg.mxu0
    %v177 = vxor.u32 %v115, 2147483648
    %v178 = vmul.f32 %v177, 1.442695
    %v179 = vpow.pop %v178
    %v180 = vadd.f32 %v179, 1.0
    %v181 = vrcp.pop %v180
    %v182 = vmul.f32 %v180, %v181
    %v183 = vsub.f32 1.0, %v182
    %v184 = vmul.f32 %v181, %v183
    %v185 = vadd.f32 %v181, %v184
    %vm186 = vweird.f32 %v180
    %vm187 = vweird.f32 %v181
    %vm188 = vmor %vm186, %vm187
    %v189 = vsel %vm188, %v181, %v185
    %v190 = vand.u32 2147483647, %v180
    %vm191 = vcmp.eq.f32.partialorder %v190, 8.507059e+37
    %v192 = vand.u32 %v180, 2147483648
    %v193 = vor.u32 1.1754944e-38, %v192
    %v194 = vsel %vm191, %v193, %v189
    %v195 = vmul.f32 1.0, %v194
    %v196 = vxor.u32 %v135, 2147483648
    %v197 = vmul.f32 %v196, 1.442695
    %v198 = vpow.pop %v197
    %v199 = vadd.f32 %v198, 1.0
    %v200 = vrcp.pop %v199
    %v201 = vmul.f32 %v199, %v200
    %v202 = vsub.f32 1.0, %v201
    %v203 = vmul.f32 %v200, %v202
    %v204 = vadd.f32 %v200, %v203
    %vm205 = vweird.f32 %v199
    %vm206 = vweird.f32 %v200
    %vm207 = vmor %vm205, %vm206
    %v208 = vsel %vm207, %v200, %v204
    %v209 = vand.u32 2147483647, %v199
    %vm210 = vcmp.eq.f32.partialorder %v209, 8.507059e+37
    %v211 = vand.u32 %v199, 2147483648
    %v212 = vor.u32 1.1754944e-38, %v211
    %v213 = vsel %vm210, %v212, %v208
    %v214 = vmul.f32 1.0, %v213
    %v215 = vtanh.pop %v155
    %v216 = vxor.u32 %v175, 2147483648
    %v217 = vmul.f32 %v216, 1.442695
    %v218 = vpow.pop %v217
    %v219 = vadd.f32 %v218, 1.0
    %v220 = vrcp.pop %v219
    %v221 = vmul.f32 %v219, %v220
    %v222 = vsub.f32 1.0, %v221
    %v223 = vmul.f32 %v220, %v222
    %v224 = vadd.f32 %v220, %v223
    %vm225 = vweird.f32 %v219
    %vm226 = vweird.f32 %v220
    %vm227 = vmor %vm225, %vm226
    %v228 = vsel %vm227, %v220, %v224
    %v229 = vand.u32 2147483647, %v219
    %vm230 = vcmp.eq.f32.partialorder %v229, 8.507059e+37
    %v231 = vand.u32 %v219, 2147483648
    %v232 = vor.u32 1.1754944e-38, %v231
    %v233 = vsel %vm230, %v232, %v228
    %v234 = vmul.f32 1.0, %v233
    %v235 = vld [vmem:[%s1] sm:$0x1]
    %v236 = vmul.f32 %v214, %v235
    %v237 = vmul.f32 %v195, %v215
    %v238 = vadd.f32 %v236, %v237
    %v239 = vtanh.pop %v238
    %v240 = vmul.f32 %v234, %v239
    %241 = vst [vmem:[%s3] sm:$0x1] %v240
    %242 = vst [vmem:[%s4] sm:$0x1] %v238
    // Predicated region
    $region18: #{lstm_cell_pallas.1} parent=1 // pred_check
      _
    $region19: #{lstm_cell_pallas.1} parent=1 // pred_check_branch
      %244 = sbr.rel (0) target = $region21
    $region20: #{lstm_cell_pallas.1} parent=1 // pred_region
      _
    $region21: #{lstm_cell_pallas.1} parent=1 // pred_fallthru
      _
    // Predicated region
    $region22: #{lstm_cell_pallas.1} parent=1 // pred_check
      _
    $region23: #{lstm_cell_pallas.1} parent=1 // pred_check_branch
      %246 = sbr.rel (0) target = $region25
    $region24: #{lstm_cell_pallas.1} parent=1 // pred_region
      _
    $region25: #{lstm_cell_pallas.1} parent=1 // pred_fallthru
      _
    // Predicated region
    $region26: #{lstm_cell_pallas.1} parent=1 // pred_check
      _
    $region27: #{lstm_cell_pallas.1} parent=1 // pred_check_branch
      %248 = sbr.rel (0) target = $region29
    $region28: #{lstm_cell_pallas.1} parent=1 // pred_region
      _
    $region29: #{lstm_cell_pallas.1} parent=1 // pred_fallthru
      _
    // Predicated region
    $region30: #{lstm_cell_pallas.1} parent=1 // pred_check
      _
    $region31: #{lstm_cell_pallas.1} parent=1 // pred_check_branch
      %250 = sbr.rel (0) target = $region33
    $region32: #{lstm_cell_pallas.1} parent=1 // pred_region
      _
    $region33: #{lstm_cell_pallas.1} parent=1 // pred_fallthru
      _
    %251 = vsyncpa [#allocation3], 1

</llo_original>
